<compile_context>
chip_gen: v6e
topology: v6e:2x2x1
jax: 0.10.0
libtpu: 0.0.40
codegen_flags: <defaults>
</compile_context>

<pallas_src>
import math
import random
import functools

import jax
import jax.numpy as jnp
from jax.experimental import pallas as pl
from jax.experimental.pallas import tpu as pltpu

NUM_AUDIO_TOKENS = 1024
NUM_TEXT_TOKENS = 128

_VMEM_LIMIT = 32 * 1024 * 1024        # explicit scoped-VMEM limit, safe on v5e..v7x
_MASK_VALUE = -2.3e38                 # ~ -0.7 * f32 max (dtype-aware "-inf")


def _round_up(x, m):
    return (x + m - 1) // m * m


def _pick_tile(full, cands=(512, 256, 384, 128)):
    # 256-aligned tiles preferred (v6e/v7x 2x256x256 MXU); 384/128 fallback (v5e).
    for c in cands:
        if full % c == 0:
            return c
    return full


# ------------------------- Pallas: fused linear kernel ----------------------
# y = act(x @ Wt + b); x bf16, Wt bf16 pre-transposed (Kp, Np); f32 MXU
# accumulation in a VMEM scratch, bias/ReLU + downcast in the last-k epilogue
# so the stored activation is bf16 (half the HBM writeback).

def _linear_kernel(a_ref, b_ref, bias_ref, o_ref, acc_ref, *, activation):
    @pl.when(pl.program_id(2) == 0)
    def _():
        acc_ref[...] = jnp.zeros_like(acc_ref)

    acc_ref[...] += jnp.dot(a_ref[...], b_ref[...],
                            preferred_element_type=jnp.float32)

    @pl.when(pl.program_id(2) == pl.num_programs(2) - 1)
    def _():
        r = acc_ref[...] + bias_ref[...]
        if activation == "relu":
            r = jnp.maximum(r, 0.0)
        o_ref[...] = r.astype(o_ref.dtype)


def pallas_linear(x2d, lin, activation=None, out_dtype=jnp.bfloat16):
    """x2d: (M, K) (bf16 preferred).  lin: packed linear dict (see pack_linear)."""
    M, K = x2d.shape
    assert K == lin["in"]
    Kp, Np = lin["Wt"].shape
    if M <= 256:
        tm = _round_up(M, 8)
        Mp = tm
    elif M <= 2048:
        tm = 256
        Mp = _round_up(M, tm)
    else:
        tm = 512
        Mp = _round_up(M, tm)
    tk = _pick_tile(Kp)
    tn = _pick_tile(Np)
    xp = x2d if x2d.dtype == jnp.bfloat16 else x2d.astype(jnp.bfloat16)
    if Mp != M or Kp != K:
        xp = jnp.pad(xp, ((0, Mp - M), (0, Kp - K)))
    out = pl.pallas_call(
        functools.partial(_linear_kernel, activation=activation),
        out_shape=jax.ShapeDtypeStruct((Mp, Np), out_dtype),
        grid_spec=pltpu.PrefetchScalarGridSpec(
            num_scalar_prefetch=0,
            grid=(Mp // tm, Np // tn, Kp // tk),
            in_specs=[pl.BlockSpec((tm, tk), lambda i, j, k: (i, k)),
                      pl.BlockSpec((tk, tn), lambda i, j, k: (k, j)),
                      pl.BlockSpec((1, tn), lambda i, j, k: (0, j))],
            out_specs=pl.BlockSpec((tm, tn), lambda i, j, k: (i, j)),
            scratch_shapes=[pltpu.VMEM((tm, tn), jnp.float32)]),
        compiler_params=pltpu.CompilerParams(
            dimension_semantics=("parallel", "parallel", "arbitrary"),
            vmem_limit_bytes=_VMEM_LIMIT),
    )(xp, lin["Wt"], lin["b"])
    return out[:M, :lin["out"]]


# -------------------- Pallas: flash (online-softmax) attention --------------
# Grid (N, Tq-blocks, Tk-blocks); Tk is the 'arbitrary' reduction axis.
# Q/K/V are read directly from the fused projection outputs via column-block
# index maps (Q = block q_blk of width d, etc.); heads are processed with a
# static in-kernel loop and the output is stored head-merged (lane-dense).

def _flash_attention_kernel(kv_lens_ref, q_ref, k_ref, v_ref, o_ref,
                            m_sc, l_sc, acc_sc, *, H, Dh, scale, causal,
                            tq, tk):
    b = pl.program_id(0)
    qi = pl.program_id(1)
    ki = pl.program_id(2)

    @pl.when(ki == 0)
    def _():
        m_sc[...] = jnp.full(m_sc.shape, _MASK_VALUE, m_sc.dtype)
        l_sc[...] = jnp.zeros(l_sc.shape, l_sc.dtype)
        acc_sc[...] = jnp.zeros(acc_sc.shape, acc_sc.dtype)

    kv_len = kv_lens_ref[b]
    # single 2-D mask (key padding + optional causal), shared by all heads
    k_idx = ki * tk + jax.lax.broadcasted_iota(jnp.int32, (tq, tk), 1)
    mask = k_idx >= kv_len
    if causal:
        q_idx = qi * tq + jax.lax.broadcasted_iota(jnp.int32, (tq, tk), 0)
        mask = mask | (k_idx > q_idx)

    q = q_ref[0]          # (tq, H*Dh) bf16
    k = k_ref[0]          # (tk, H*Dh) bf16
    v = v_ref[0]          # (tk, H*Dh) bf16

    for h in range(H):
        qh = q[:, h * Dh:(h + 1) * Dh]
        kh = k[:, h * Dh:(h + 1) * Dh]
        vh = v[:, h * Dh:(h + 1) * Dh]
        # TODO(synk): if the MLIR dump shows a per-step vxpose of kh, pre-lay K
        # per head as (Dh, Tk) instead of slicing the row-major projection.
        s = jax.lax.dot_general(qh, kh, (((1,), (1,)), ((), ())),
                                preferred_element_type=jnp.float32) * scale
        s = jnp.where(mask, _MASK_VALUE, s)
        m_prev = m_sc[h]
        m_new = jnp.maximum(m_prev, jnp.max(s, axis=-1, keepdims=True))
        alpha = jnp.exp(m_prev - m_new)
        p = jnp.exp(s - m_new)
        l_sc[h] = alpha * l_sc[h] + jnp.sum(p, axis=-1, keepdims=True)
        acc_sc[h] = alpha * acc_sc[h] + jax.lax.dot_general(
            p.astype(jnp.bfloat16), vh, (((1,), (0,)), ((), ())),
            preferred_element_type=jnp.float32)
        m_sc[h] = m_new

    @pl.when(ki == pl.num_programs(2) - 1)
    def _():
        # exact division (epilogue only), merged-head lane-dense bf16 store
        outs = [acc_sc[h] / l_sc[h] for h in range(H)]
        o_ref[0] = jnp.concatenate(outs, axis=-1).astype(o_ref.dtype)


def pallas_attention(q_src, q_blk, kv_src, k_blk, v_blk, kv_lens,
                     d, nhead, scale, causal):
    """q_src: (N, Tq, Cq) bf16; Q lives in column block `q_blk` of width d.
    kv_src: (N, Tk, Ckv) bf16; K / V live in column blocks k_blk / v_blk.
    Returns head-merged output (N, Tq, d) bf16."""
    N, Tq, Cq = q_src.shape
    _, Tk, Ckv = kv_src.shape
    assert d % 128 == 0, "head-merged layout requires d_model % 128 == 0"
    assert Cq % d == 0 and Ckv % d == 0 and d % nhead == 0
    Dh = d // nhead

    tq = min(256, _round_up(Tq, 8))
    Tqp = _round_up(Tq, tq)
    tk = min(512, _round_up(Tk, 128))          # Tk padded to full 128-lane blocks
    Tkp = _round_up(Tk, tk)

    qp = q_src if Tqp == Tq else jnp.pad(q_src, ((0, 0), (0, Tqp - Tq), (0, 0)))
    kvp = kv_src if Tkp == Tk else jnp.pad(kv_src, ((0, 0), (0, Tkp - Tk), (0, 0)))

    out = pl.pallas_call(
        functools.partial(_flash_attention_kernel, H=nhead, Dh=Dh,
                          scale=scale, causal=causal, tq=tq, tk=tk),
        out_shape=jax.ShapeDtypeStruct((N, Tqp, d), jnp.bfloat16),
        grid_spec=pltpu.PrefetchScalarGridSpec(
            num_scalar_prefetch=1,
            grid=(N, Tqp // tq, Tkp // tk),
            in_specs=[
                pl.BlockSpec((1, tq, d), lambda b, i, j, lens: (b, i, q_blk)),
                pl.BlockSpec((1, tk, d), lambda b, i, j, lens: (b, j, k_blk)),
                pl.BlockSpec((1, tk, d), lambda b, i, j, lens: (b, j, v_blk)),
            ],
            out_specs=pl.BlockSpec((1, tq, d), lambda b, i, j, lens: (b, i, 0)),
            scratch_shapes=[pltpu.VMEM((nhead, tq, 1), jnp.float32),   # m
                            pltpu.VMEM((nhead, tq, 1), jnp.float32),   # l
                            pltpu.VMEM((nhead, tq, Dh), jnp.float32)]),  # acc
        compiler_params=pltpu.CompilerParams(
            dimension_semantics=("parallel", "parallel", "arbitrary"),
            vmem_limit_bytes=_VMEM_LIMIT),
    )(kv_lens.astype(jnp.int32), qp, kvp, kvp)
    return out[:, :Tq, :]


# ------------------------ Pallas: row-tiled LayerNorm ------------------------
# bf16 in / bf16 out, f32 statistics.
# TODO(synk): fully fusing LN into the consumer matmul needs the whole row in
# one k-block; kept standalone for generality.

def _layernorm_kernel(x_ref, g_ref, b_ref, o_ref, *, eps):
    x = x_ref[...].astype(jnp.float32)
    mu = jnp.mean(x, axis=-1, keepdims=True)
    var = jnp.mean(jnp.square(x - mu), axis=-1, keepdims=True)
    y = (x - mu) * jax.lax.rsqrt(var + eps) * g_ref[...] + b_ref[...]
    o_ref[...] = y.astype(o_ref.dtype)


def pallas_layer_norm(x, gamma, beta, eps=1e-5):
    shp = x.shape
    d = shp[-1]
    x2 = x.reshape(-1, d)
    if x2.dtype != jnp.bfloat16:
        x2 = x2.astype(jnp.bfloat16)
    R = x2.shape[0]
    tile = min(512, _round_up(R, 8))
    Rp = _round_up(R, tile)
    x2p = x2 if Rp == R else jnp.pad(x2, ((0, Rp - R), (0, 0)))
    out = pl.pallas_call(
        functools.partial(_layernorm_kernel, eps=eps),
        out_shape=jax.ShapeDtypeStruct((Rp, d), jnp.bfloat16),
        grid_spec=pltpu.PrefetchScalarGridSpec(
            num_scalar_prefetch=0,
            grid=(Rp // tile,),
            in_specs=[pl.BlockSpec((tile, d), lambda i: (i, 0)),
                      pl.BlockSpec((1, d), lambda i: (0, 0)),
                      pl.BlockSpec((1, d), lambda i: (0, 0))],
            out_specs=pl.BlockSpec((tile, d), lambda i: (i, 0))),
        compiler_params=pltpu.CompilerParams(
            dimension_semantics=("parallel",),
            vmem_limit_bytes=_VMEM_LIMIT),
    )(x2p, gamma.reshape(1, d).astype(jnp.float32),
      beta.reshape(1, d).astype(jnp.float32))
    return out[:R].reshape(shp)


# ------------------------------ model pieces --------------------------------

def pack_linear(W, b=None):
    """W: (out, in) f32 (PyTorch layout).  Pre-transpose + pad once, bf16.
    Pads to 256-multiples where cheap (>=512), else 128 (v5e-friendly)."""
    out_dim, in_dim = W.shape
    if b is None:
        b = jnp.zeros((out_dim,), jnp.float32)
    Kp = _round_up(in_dim, 256 if in_dim >= 512 else 128)
    Np = _round_up(out_dim, 256 if out_dim >= 512 else 128)
    Wt = jnp.pad(jnp.transpose(W).astype(jnp.bfloat16),
                 ((0, Kp - in_dim), (0, Np - out_dim)))
    bp = jnp.pad(b.astype(jnp.float32), (0, Np - out_dim)).reshape(1, Np)
    return {"Wt": Wt, "b": bp, "in": in_dim, "out": out_dim}


def make_pad_mask(lengths, max_len):
    return jnp.arange(max_len)[None, :] >= lengths[:, None]


def sine_positional_embedding(x, d_model, scale=True):
    _, T, d = x.shape
    pos = jnp.arange(T, dtype=jnp.float32)[:, None]
    div = jnp.exp(jnp.arange(0, d, 2, dtype=jnp.float32) *
                  (-math.log(10000.0) / d))
    pe = jnp.zeros((T, d), jnp.float32)
    pe = pe.at[:, 0::2].set(jnp.sin(pos * div))
    pe = pe.at[:, 1::2].set(jnp.cos(pos * div))
    x_scale = math.sqrt(d) if scale else 1.0
    # TODO(synk): SinePositionalEmbedding dropout(p=0.1) skipped (deterministic).
    return x * x_scale + pe[None, :, :]


def self_attention(h, p, lens, nhead, causal):
    N, T, d = h.shape
    qkv = pallas_linear(h.reshape(N * T, d), p["qkv"])          # (N*T, 3d) fused
    qkv = qkv.reshape(N, T, 3 * d)                               # free reshape
    o = pallas_attention(qkv, 0, qkv, 1, 2, lens, d, nhead,
                         1.0 / math.sqrt(d // nhead), causal)
    return pallas_linear(o.reshape(N * T, d), p["out"]).reshape(N, T, d)


def cross_attention(h, mem2d, S, p, mem_lens, nhead):
    N, T, d = h.shape
    q = pallas_linear(h.reshape(N * T, d), p["q"]).reshape(N, T, d)
    kv = pallas_linear(mem2d, p["kv"]).reshape(N, S, 2 * d)      # fused K/V
    o = pallas_attention(q, 0, kv, 0, 1, mem_lens, d, nhead,
                         1.0 / math.sqrt(d // nhead), False)
    return pallas_linear(o.reshape(N * T, d), p["out"]).reshape(N, T, d)


def decoder_forward(dp, tgt, stage_emb, memory, tgt_lens, mem_lens, nhead, causal):
    """TransformerDecoder (norm_first=True) + AdaptiveLayerNorm final norm.
    tgt / memory are bf16 (N, T, d) / (N, S, d)."""
    N, T, d = tgt.shape
    S = memory.shape[1]
    mem2d = memory.reshape(N * S, d)
    x = tgt
    for lp in dp["layers"]:
        h = pallas_layer_norm(x, lp["ln1_g"], lp["ln1_b"])
        x = x + self_attention(h, lp["sa"], tgt_lens, nhead, causal)
        h = pallas_layer_norm(x, lp["ln2_g"], lp["ln2_b"])
        x = x + cross_attention(h, mem2d, S, lp["ca"], mem_lens, nhead)
        h = pallas_layer_norm(x, lp["ln3_g"], lp["ln3_b"])
        ff = pallas_linear(h.reshape(-1, d), lp["ff1"], activation="relu")
        ff = pallas_linear(ff, lp["ff2"]).reshape(N, T, d)
        x = x + ff
        # TODO(synk): residual/attention dropout(p=0.1) skipped (deterministic).
    # AdaptiveLayerNorm final norm; the (1, d) projection is M=1 -> plain jnp.
    wb = stage_emb.astype(jnp.float32) @ dp["ada_W"].T + dp["ada_b"]   # (1, 2d)
    w, b = wb[:, :d], wb[:, d:]
    xn = pallas_layer_norm(x, dp["ln_g"], dp["ln_b"])
    return w[None].astype(jnp.bfloat16) * xn + b[None].astype(jnp.bfloat16)


# ----------------------------- losses / metrics -----------------------------

def cross_entropy_sum(logits_nct, targets, ignore_index=None):
    logits = logits_nct.astype(jnp.float32)
    m = jnp.max(logits, axis=1, keepdims=True)
    lse = jnp.log(jnp.sum(jnp.exp(logits - m), axis=1, keepdims=True)) + m
    tl = jnp.take_along_axis(logits, targets[:, None, :], axis=1)
    nll = (lse - tl)[:, 0, :]
    if ignore_index is not None:
        nll = jnp.where(targets == ignore_index, 0.0, nll)
    return jnp.sum(nll)


def topk_accuracy_samplewise(logits_nct, targets, ignore_index, k=10):
    tl = jnp.take_along_axis(logits_nct, targets[:, None, :], axis=1)[:, 0, :]
    rank = jnp.sum((logits_nct > tl[:, None, :]).astype(jnp.int32), axis=1)
    correct = rank < k
    valid = targets != ignore_index
    num = jnp.sum((correct & valid).astype(jnp.float32), axis=1)
    den = jnp.maximum(jnp.sum(valid.astype(jnp.float32), axis=1), 1.0)
    return num / den


# ------------------------------ parameter init ------------------------------

class _KeyGen:
    def __init__(self, key):
        self._key = key

    def __call__(self):
        self._key, sub = jax.random.split(self._key)
        return sub


def _normal(kg, shape, std=0.02):
    return std * jax.random.normal(kg(), shape, dtype=jnp.float32)


def _init_mha_self(kg, d):
    Wq, Wk, Wv, Wo = (_normal(kg, (d, d)) for _ in range(4))
    return dict(qkv=pack_linear(jnp.concatenate([Wq, Wk, Wv], axis=0)),
                out=pack_linear(Wo))


def _init_mha_cross(kg, d):
    Wq, Wk, Wv, Wo = (_normal(kg, (d, d)) for _ in range(4))
    return dict(q=pack_linear(Wq),
                kv=pack_linear(jnp.concatenate([Wk, Wv], axis=0)),
                out=pack_linear(Wo))


def _init_decoder(kg, d, num_layers):
    layers = []
    for _ in range(num_layers):
        layers.append(dict(
            sa=_init_mha_self(kg, d),
            ca=_init_mha_cross(kg, d),
            ff1=pack_linear(_normal(kg, (4 * d, d))),
            ff2=pack_linear(_normal(kg, (d, 4 * d))),
            ln1_g=jnp.ones((d,), jnp.float32), ln1_b=jnp.zeros((d,), jnp.float32),
            ln2_g=jnp.ones((d,), jnp.float32), ln2_b=jnp.zeros((d,), jnp.float32),
            ln3_g=jnp.ones((d,), jnp.float32), ln3_b=jnp.zeros((d,), jnp.float32)))
    return dict(layers=layers,
                ada_W=_normal(kg, (2 * d, d)),
                ada_b=jnp.zeros((2 * d,), jnp.float32),
                ln_g=jnp.ones((d,), jnp.float32),
                ln_b=jnp.zeros((d,), jnp.float32))


def init_vallf_params(key, d_model, nhead, num_layers):
    kg = _KeyGen(key)
    p = {}
    p["text_embedding"] = _normal(kg, (NUM_TEXT_TOKENS, d_model))
    audio_embs = [_normal(kg, (NUM_AUDIO_TOKENS + 1, d_model))]
    for _ in range(6):
        audio_embs.append(_normal(kg, (NUM_AUDIO_TOKENS, d_model)))
    p["audio_embeddings"] = audio_embs
    p["stage_embeddings"] = [_normal(kg, (1, d_model)) for _ in range(8)]
    p["ar_decoder"] = _init_decoder(kg, d_model, num_layers)
    p["nar_decoder"] = _init_decoder(kg, d_model, num_layers)
    # predict layers: weight tying exactly as in the module
    pred = [pack_linear(audio_embs[0])]                          # (1025, d) tied
    for j in range(1, 6):
        pred.append(pack_linear(audio_embs[j + 1]))              # (1024, d) tied
    pred.append(pack_linear(_normal(kg, (NUM_AUDIO_TOKENS, d_model))))
    pred.append(pack_linear(_normal(kg, (NUM_AUDIO_TOKENS, d_model))))
    p["predict"] = pred
    return p


# ------------------------------- VALLF forward -------------------------------

def vallf_forward(params, x, x_lens, y, y_lens, d_model, nhead, reduction="sum"):
    assert x.ndim == 2 and x_lens.ndim == 1 and y.ndim == 3 and y_lens.ndim == 1
    assert reduction == "sum"
    N, S = x.shape
    T = y.shape[1]

    x_emb = params["text_embedding"][x]                    # (N, S, d)
    # text_prenet = Identity (add_prenet=False)
    x_pos = sine_positional_embedding(x_emb, d_model, scale=True)   # f32 (returned)
    memory = x_pos.astype(jnp.bfloat16)                    # bf16 residual stream

    y_mask = make_pad_mask(y_lens, T)                      # (N, T)
    y_mask_int = y_mask.astype(jnp.int32)
    codes = y.astype(jnp.int32) * (1 - y_mask_int[..., None])

    # pad_y_eos
    y0 = jnp.pad(codes[..., 0], ((0, 0), (0, 1))) + \
        NUM_AUDIO_TOKENS * jnp.pad(y_mask_int, ((0, 0), (0, 1)), constant_values=1)
    ar_y, ar_targets = y0[:, :-1], y0[:, 1:]

    y_emb = params["audio_embeddings"][0][ar_y]
    # audio_prenet = Identity
    y_pos = sine_positional_embedding(y_emb, d_model, scale=True)   # f32

    # AR decoder: causal self-attention + y/x key-padding via lengths
    y_dec = decoder_forward(params["ar_decoder"], y_pos.astype(jnp.bfloat16),
                            params["stage_embeddings"][0], memory,
                            y_lens, x_lens, nhead, causal=True)
    ar_logits = pallas_linear(y_dec.reshape(-1, d_model), params["predict"][0],
                              out_dtype=jnp.float32)
    ar_logits = ar_logits.reshape(N, T, NUM_AUDIO_TOKENS + 1)
    ar_logits = jnp.transpose(ar_logits, (0, 2, 1))        # (N, C, T)
    total_loss = cross_entropy_sum(ar_logits, ar_targets)
    metrics = {}
    metrics["ArTop10Accuracy"] = jnp.mean(
        topk_accuracy_samplewise(ar_logits, ar_targets, NUM_AUDIO_TOKENS)) \
        * jnp.sum(y_lens).astype(jnp.float32)

    # NAR train-stage selection, identical RNG to the module (random.Random(0))
    train_stage = random.Random(0).choices(
        (1, 2, 3, 4, 5, 6, 7), weights=[1.0 / 7] * 7, k=1)[0]
    for i in range(0, train_stage - 1):
        y_pos = y_pos + params["audio_embeddings"][i + 1][codes[..., i + 1]]
    nar_targets = codes[..., train_stage] + NUM_AUDIO_TOKENS * y_mask_int
    y_dec = decoder_forward(params["nar_decoder"], y_pos.astype(jnp.bfloat16),
                            params["stage_embeddings"][train_stage], memory,
                            y_lens, x_lens, nhead, causal=False)
    pred_lin = params["predict"][train_stage]
    C = pred_lin["out"]
    nar_logits = pallas_linear(y_dec.reshape(-1, d_model), pred_lin,
                               out_dtype=jnp.float32)
    nar_logits = jnp.transpose(nar_logits.reshape(N, T, C), (0, 2, 1))  # (N,C,T)
    total_loss = total_loss + cross_entropy_sum(
        nar_logits, nar_targets, ignore_index=NUM_AUDIO_TOKENS)
    padded = jnp.concatenate(
        [jnp.full((N, 1, T), jnp.min(nar_logits), dtype=nar_logits.dtype),
         nar_logits], axis=1)
    metrics["NarTop10Accuracy"] = jnp.mean(
        topk_accuracy_samplewise(padded, nar_targets, NUM_AUDIO_TOKENS)) \
        * jnp.sum(y_lens).astype(jnp.float32)

    return (x_pos, codes), total_loss / 2.0, metrics


# ----------------------------------- main ------------------------------------

if __name__ == "__main__":
    d_model, nhead, num_layers = 128, 2, 2
    N, S, T = 2, 8, 6

    key = jax.random.PRNGKey(0)
    k_p, k_x, k_y = jax.random.split(key, 3)
    params = init_vallf_params(k_p, d_model, nhead, num_layers)

    x = jax.random.randint(k_x, (N, S), 0, NUM_TEXT_TOKENS, dtype=jnp.int32)
    y = jax.random.randint(k_y, (N, T, 8), 0, NUM_AUDIO_TOKENS, dtype=jnp.int32)
    x_lens = jnp.array([S, S - 2], dtype=jnp.int32)
    y_lens = jnp.array([T, T - 2], dtype=jnp.int32)
    assert bool(jnp.all(x_lens > 0))

    (x_out, codes), total_loss, metrics = vallf_forward(
        params, x, x_lens, y, y_lens, d_model, nhead, reduction="sum")

    jax.block_until_ready(total_loss)
    jax.block_until_ready(x_out)
    jax.block_until_ready(codes)
    for v in metrics.values():
        jax.block_until_ready(v)

    print("KERNEL_OK")
</pallas_src>

<mosaic_0001>
module attributes {stable_mosaic.version = 11 : i64} {
  func.func @_layernorm_kernel(%arg0: i32, %arg1: memref<16x128xbf16, #tpu.memory_space<vmem>>, %arg2: memref<1x128xf32, #tpu.memory_space<vmem>>, %arg3: memref<1x128xf32, #tpu.memory_space<vmem>>, %arg4: memref<16x128xbf16, #tpu.memory_space<vmem>>) attributes {dimension_semantics = [#tpu.dimension_semantics<parallel>], iteration_bounds = array<i64: 1>, scalar_prefetch = 0 : i64, scratch_operands = 0 : i64, tpu.core_type = #tpu.core_type<tc>, window_params = [{transform_indices = @transform_0, window_bounds = array<i64: 16, 128>}, {pipeline_mode = #tpu.pipeline_mode<synchronous>, transform_indices = @transform_1, window_bounds = array<i64: 1, 128>}, {pipeline_mode = #tpu.pipeline_mode<synchronous>, transform_indices = @transform_2, window_bounds = array<i64: 1, 128>}, {transform_indices = @transform_3, window_bounds = array<i64: 16, 128>}]} {
    %c0 = arith.constant 0 : index
    %c0_0 = arith.constant 0 : index
    %0 = vector.load %arg1[%c0, %c0_0] : memref<16x128xbf16, #tpu.memory_space<vmem>>, vector<16x128xbf16>
    %1 = arith.extf %0 : vector<16x128xbf16> to vector<16x128xf32>
    %cst = arith.constant dense<0.000000e+00> : vector<16xf32>
    %2 = vector.multi_reduction <add>, %1, %cst [1] : vector<16x128xf32> to vector<16xf32>
    %3 = vector.shape_cast %2 : vector<16xf32> to vector<16x1xf32>
    %cst_1 = arith.constant 1.280000e+02 : f32
    %4 = vector.broadcast %cst_1 : f32 to vector<16x1xf32>
    %5 = arith.divf %3, %4 : vector<16x1xf32>
    %6 = vector.broadcast %5 : vector<16x1xf32> to vector<16x128xf32>
    %7 = arith.subf %1, %6 : vector<16x128xf32>
    %8 = arith.mulf %7, %7 : vector<16x128xf32>
    %cst_2 = arith.constant dense<0.000000e+00> : vector<16xf32>
    %9 = vector.multi_reduction <add>, %8, %cst_2 [1] : vector<16x128xf32> to vector<16xf32>
    %10 = vector.shape_cast %9 : vector<16xf32> to vector<16x1xf32>
    %cst_3 = arith.constant 1.280000e+02 : f32
    %11 = vector.broadcast %cst_3 : f32 to vector<16x1xf32>
    %12 = arith.divf %10, %11 : vector<16x1xf32>
    %13 = vector.broadcast %5 : vector<16x1xf32> to vector<16x128xf32>
    %14 = arith.subf %1, %13 : vector<16x128xf32>
    %cst_4 = arith.constant 9.99999974E-6 : f32
    %15 = vector.broadcast %cst_4 : f32 to vector<16x1xf32>
    %16 = arith.addf %12, %15 : vector<16x1xf32>
    %17 = math.rsqrt %16 : vector<16x1xf32>
    %18 = vector.broadcast %17 : vector<16x1xf32> to vector<16x128xf32>
    %19 = arith.mulf %14, %18 : vector<16x128xf32>
    %c0_5 = arith.constant 0 : index
    %c0_6 = arith.constant 0 : index
    %20 = vector.load %arg2[%c0_5, %c0_6] : memref<1x128xf32, #tpu.memory_space<vmem>>, vector<1x128xf32>
    %21 = vector.broadcast %20 : vector<1x128xf32> to vector<16x128xf32>
    %22 = arith.mulf %19, %21 : vector<16x128xf32>
    %c0_7 = arith.constant 0 : index
    %c0_8 = arith.constant 0 : index
    %23 = vector.load %arg3[%c0_7, %c0_8] : memref<1x128xf32, #tpu.memory_space<vmem>>, vector<1x128xf32>
    %24 = vector.broadcast %23 : vector<1x128xf32> to vector<16x128xf32>
    %25 = arith.addf %22, %24 : vector<16x128xf32>
    %26 = arith.truncf %25 : vector<16x128xf32> to vector<16x128xbf16>
    %c0_9 = arith.constant 0 : index
    %c0_10 = arith.constant 0 : index
    %27 = vector.load %arg4[%c0_9, %c0_10] : memref<16x128xbf16, #tpu.memory_space<vmem>>, vector<16x128xbf16>
    tpu.vector_store %arg4[%c0_9, %c0_10], %26 {strides = array<i32>} : memref<16x128xbf16, #tpu.memory_space<vmem>>, vector<16x128xbf16>,
    return
  }
  func.func @transform_0(%arg0: i32) -> (i32, i32) {
    %c0_i32 = arith.constant 0 : i32
    %c0_i32_0 = arith.constant 0 : i32
    return %arg0, %c0_i32 : i32, i32
  }
  func.func @transform_1(%arg0: i32) -> (i32, i32) {
    %c0_i32 = arith.constant 0 : i32
    %c0_i32_0 = arith.constant 0 : i32
    %c0_i32_1 = arith.constant 0 : i32
    return %c0_i32, %c0_i32_0 : i32, i32
  }
  func.func @transform_2(%arg0: i32) -> (i32, i32) {
    %c0_i32 = arith.constant 0 : i32
    %c0_i32_0 = arith.constant 0 : i32
    %c0_i32_1 = arith.constant 0 : i32
    return %c0_i32, %c0_i32_0 : i32, i32
  }
  func.func @transform_3(%arg0: i32) -> (i32, i32) {
    %c0_i32 = arith.constant 0 : i32
    %c0_i32_0 = arith.constant 0 : i32
    return %arg0, %c0_i32 : i32, i32
  }
}

</mosaic_0001>

<llo_original>
// kernel: tpu_custom_call.1
$region0: #{tpu_custom_call.1}
  #allocation0 [shape = 'u32[]', space=smem, size = 0x4, offset = 0x4, fixed_abs, tag = 'smem constant byte address 0x4 - core index']
  #allocation1 [shape = 'u32[144,128]{1,0:T(1,128)}', space=vmem, size = 0x12000, scoped, tag = 'internal scratch']
  %s0 = inlined_call_operand.hbm [shape: bf16[16,128], index: 0, kind: input, shape index: {}]
  %s1 = inlined_call_operand.vmem [shape: f32[1,128], index: 1, kind: input, shape index: {}]
  %s2 = inlined_call_operand.vmem [shape: f32[1,128], index: 2, kind: input, shape index: {}]
  %s3 = inlined_call_operand.hbm [shape: bf16[16,128], index: 3, kind: output, shape index: {}]
  %s4 = sld [smem:[#allocation0]]
  $region26: #{tpu_custom_call.1} parent=0
    _
  %s6 = ssub.s32 1, %s4
  %s7 = scalar_select 0, %s6, %s4
  $region1: #{tpu_custom_call.1} parent=0
    #allocation2 [shape = 'u8[4096]{0}', space=vmem, size = 0x1000, scoped, tag = 'input window, operand 0, single buffered']
    #allocation3 [shape = 's32[1]{0}', space=sflag, size = 0x4, scoped, tag = 'scoped memory for tpu_custom_call.1']
    #allocation4 [shape = 's32[1]{0}', space=sflag, size = 0x4, scoped, tag = 'scoped memory for tpu_custom_call.1']
    #allocation5 [shape = 'u8[4096]{0}', space=vmem, size = 0x1000, scoped, tag = 'output window, operand 0, single buffered']
    %8 = vsyncpa [#allocation3], 0
    %9 = vsyncpa [#allocation4], 0
    // Predicated region
    $region2: #{tpu_custom_call.1} parent=1 // pred_check
      _
    $region3: #{tpu_custom_call.1} parent=1 // pred_check_branch
      %11 = sbr.rel (0) target = $region5
    $region4: #{tpu_custom_call.1} parent=1 // pred_region
      %s13 = ssub.s32 128, 128
      %14 = vsyncadd [#allocation3], %s13
      %s15 = sshll.u32 [#allocation2], 4
      %s16 = int_to_ptr.vmem [resolvable:$true] %s15
      %21 = dma.hbm_to_vmem [thread:$0]  %s0, 128, %s16, [#allocation3], 64, 64, 4
    $region5: #{tpu_custom_call.1} parent=1 // pred_fallthru
      _
    // Predicated region
    $region6: #{tpu_custom_call.1} parent=1 // pred_check
      _
    $region7: #{tpu_custom_call.1} parent=1 // pred_check_branch
      %23 = sbr.rel (0) target = $region9
    $region8: #{tpu_custom_call.1} parent=1 // pred_region
      _
    $region9: #{tpu_custom_call.1} parent=1 // pred_fallthru
      _
    // Predicated region
    $region10: #{tpu_custom_call.1} parent=1 // pred_check
      _
    $region11: #{tpu_custom_call.1} parent=1 // pred_check_branch
      %25 = sbr.rel (0) target = $region13
    $region12: #{tpu_custom_call.1} parent=1 // pred_region
      _
    $region13: #{tpu_custom_call.1} parent=1 // pred_fallthru
      _
    // Predicated region
    $region14: #{tpu_custom_call.1} parent=1 // pred_check
      _
    $region15: #{tpu_custom_call.1} parent=1 // pred_check_branch
      %27 = sbr.rel (0) target = $region17
    $region16: #{tpu_custom_call.1} parent=1 // pred_region
      %28 = dma.done [#allocation3], 128
    $region17: #{tpu_custom_call.1} parent=1 // pred_fallthru
      _
    %v29 = vld [vmem:[#allocation2] sm:$0xf]
    %v30 = vld [vmem:[#allocation2 + $0x4] sm:$0xf]
    %v31 = vunpack.c.l.bf16 %v29
    %v32 = vunpack.c.l.bf16 %v30
    %33 = vadd.xlane.f32.xlu0 %v31
    %v34 = vpop.xlane.xlu0 %33
    %35 = vadd.xlane.f32.xlu0 %v32
    %v36 = vpop.xlane.xlu0 %35
    %v37 = vrcp.pop 128.0
    %v38 = vmul.f32 %v34, %v37
    %v39 = vmul.f32 %v36, %v37
    %v40 = vsub.f32 %v31, %v38
    %v41 = vsub.f32 %v32, %v39
    %v42 = vmul.f32 %v40, %v40
    %v43 = vmul.f32 %v41, %v41
    %44 = vadd.xlane.f32.xlu0 %v42
    %v45 = vpop.xlane.xlu0 %44
    %46 = vadd.xlane.f32.xlu0 %v43
    %v47 = vpop.xlane.xlu0 %46
    %v48 = vmul.f32 %v45, %v37
    %v49 = vmul.f32 %v47, %v37
    %v50 = vadd.f32 %v48, 1e-05
    %v51 = vadd.f32 %v49, 1e-05
    %v52 = vrsqrt.pop %v50
    %v53 = vrsqrt.pop %v51
    %v54 = vmul.f32 %v40, %v52
    %v55 = vmul.f32 %v41, %v53
    %v56 = vld [vmem:[%s1] sm:$0x1]
    %v58 = vlaneseq
    %v59 = vshrl.u32 %v58, 7
    %v60 = vsub.s32 0, %v59
    %v61 = vrot.slane %v56, %v60
    %v63 = vmul.f32 %v54, %v61
    %v64 = vmul.f32 %v55, %v61
    %v65 = vld [vmem:[%s2] sm:$0x1]
    %v67 = vlaneseq
    %v68 = vshrl.u32 %v67, 7
    %v69 = vsub.s32 0, %v68
    %v70 = vrot.slane %v65, %v69
    %v72 = vadd.f32 %v63, %v70
    %v73 = vadd.f32 %v64, %v70
    %v74 = vpack.c.bf16 %v73, %v72
    %v76 = vunpack.c.l.b16 %v74
    %v77 = vunpack.c.h.b16 %v74
    %v78 = vpack.c.b16 %v76, %v76
    %v79 = vpack.c.b16 %v77, %v77
    %82 = vst [vmem:[#allocation5] sm:$0xf] %v78
    %83 = vst [vmem:[#allocation5 + $0x4] sm:$0xf] %v79
    // Predicated region
    $region18: #{tpu_custom_call.1} parent=1 // pred_check
      _
    $region19: #{tpu_custom_call.1} parent=1 // pred_check_branch
      %85 = sbr.rel (0) target = $region21
    $region20: #{tpu_custom_call.1} parent=1 // pred_region
      %s87 = ssub.s32 128, 128
      %88 = vsyncadd [#allocation4], %s87
      %s89 = sshll.u32 [#allocation5], 4
      %s90 = int_to_ptr.vmem [resolvable:$true] %s89
      %95 = dma.vmem_to_hbm [thread:$0]  %s90, 128, %s3, [#allocation4], 64, 64, 4
    $region21: #{tpu_custom_call.1} parent=1 // pred_fallthru
      _
    // Predicated region
    $region22: #{tpu_custom_call.1} parent=1 // pred_check
      _
    $region23: #{tpu_custom_call.1} parent=1 // pred_check_branch
      %97 = sbr.rel (0) target = $region25
    $region24: #{tpu_custom_call.1} parent=1 // pred_region
      %98 = dma.done [#allocation4], 128
    $region25: #{tpu_custom_call.1} parent=1 // pred_fallthru
      _
    %99 = vsyncpa [#allocation3], 1
    %100 = vsyncpa [#allocation4], 1

</llo_original>
